<compile_context>
chip_gen: v7x
topology: tpu7x:2x2x1
jax: 0.10.0
libtpu: 0.0.40
codegen_flags: <defaults>
</compile_context>

<pallas_src>
import functools
import math

import jax
import jax.numpy as jnp
from jax.experimental import pallas as pl
from jax.experimental.pallas import tpu as pltpu

EPS = 1e-5  # nn.BatchNorm2d default eps


def _mish(x):
    # Mish(x) = x * tanh(softplus(x)).  With u = e^x:
    #   tanh(log(1+u)) = (u^2 + 2u) / (u^2 + 2u + 2)
    # -> one EUP exp + one exact reciprocal instead of exp+log1p+tanh.
    u = jnp.exp(jnp.minimum(x, 20.0))        # above 20 the result is exactly x
    n = u * (u + 2.0)
    return x * n * pl.reciprocal(n + 2.0, approx=False)


def _bottleneck_kernel(x_ref, w1_ref, b1_ref, w2_ref, b2_ref, mask_ref, o_ref,
                       *, W, add, mxu_dtype, accum_taps):
    """One grid step = B images folded into the lane axis.

    Layout: channels on sublanes, (image, padded H*W) flattened on lanes.
    """
    L = x_ref.shape[-1]                       # B * HW_padded lanes
    x = x_ref[...]                            # (C1, L) f32

    # ---- cv1: 1x1 conv + BN (folded into w1/b1) + Mish ---------------------
    t = jnp.dot(w1_ref[...], x.astype(mxu_dtype),
                preferred_element_type=jnp.float32) + b1_ref[...]
    t = _mish(t)                              # (c_, L) f32

    # ---- cv2: 3x3 "same" conv as 9 lane-rolled taps -------------------------
    # out[:, m] uses t[:, m + s] with s = dy*W + dx.  pltpu.roll is an XLU op;
    # the (9, L) border mask zeroes taps that fall outside the *output lane's*
    # own image, which also kills image-to-image and pad-lane wrap-around.
    mask = mask_ref[...]                      # (9, L), 0/1 in mxu_dtype
    c_ = t.shape[0]
    C2 = o_ref.shape[0]
    offsets = [(ky - 1) * W + (kx - 1) for ky in range(3) for kx in range(3)]

    if accum_taps:
        # Large c_: 9 accumulating matmuls, no (9*c_, L) concat temporary.
        t_m = t.astype(mxu_dtype)
        acc = jnp.zeros((C2, L), jnp.float32)
        for k, s in enumerate(offsets):
            tap = t_m if s == 0 else pltpu.roll(t_m, shift=(-s) % L, axis=1)
            if s != 0:
                tap = tap * mask[k:k + 1]
            acc = acc + jnp.dot(w2_ref[:, k * c_:(k + 1) * c_], tap,
                                preferred_element_type=jnp.float32)
        y = acc + b2_ref[...]
    else:
        # Small c_: concat taps (f32, sublane-tile aligned) to K = 9*c_, cast
        # once, and do a single MXU matmul.
        taps = []
        for k, s in enumerate(offsets):
            if s == 0:
                taps.append(t)
            else:
                taps.append(pltpu.roll(t, shift=(-s) % L, axis=1) * mask[k:k + 1])
        t_cat = jnp.concatenate(taps, axis=0).astype(mxu_dtype)   # (9*c_, L)
        y = jnp.dot(w2_ref[...], t_cat,
                    preferred_element_type=jnp.float32) + b2_ref[...]

    y = _mish(y)                              # (C2, L) f32
    if add:                                   # shortcut and c1 == c2
        y = y + x
    o_ref[...] = y.astype(o_ref.dtype)


def make_tap_mask(H, W, HWp, n_imgs, dtype):
    """(9, n_imgs*HWp) mask: 1 where the (ky,kx) tap of that output lane is
    inside its own image (pad lanes / neighboring images never contribute)."""
    hh = jnp.arange(H)[:, None]
    ww = jnp.arange(W)[None, :]
    rows = []
    for ky in range(3):
        for kx in range(3):
            dy, dx = ky - 1, kx - 1
            m = ((hh + dy >= 0) & (hh + dy < H) &
                 (ww + dx >= 0) & (ww + dx < W)).reshape(H * W)
            rows.append(jnp.pad(m, (0, HWp - H * W)))
    mask9 = jnp.stack(rows, axis=0).astype(dtype)        # (9, HWp)
    return jnp.tile(mask9, (1, n_imgs))                  # (9, n_imgs*HWp)


def bottleneck_forward(x_nchw, kp, *, mask=None, num_steps=None, accum_taps=None):
    """Fused Bottleneck forward.  x: (N, C1, H, W) -> (N, C2, H, W)."""
    N, C1, H, W = x_nchw.shape
    HW = H * W
    HWp = ((HW + 127) // 128) * 128            # lane-dense (multiple of 128)
    c_ = kp["w1"].shape[0]
    C2 = kp["w2"].shape[0]
    mxu_dtype = kp["w1"].dtype

    if num_steps is None:
        # 2 parallel steps when possible (one half-batch per v7x TensorCore);
        # otherwise a single big step.  v5e/v6e run steps sequentially anyway.
        num_steps = 2 if (N % 2 == 0 and N >= 2) else 1
    assert N % num_steps == 0
    B = N // num_steps                         # images per grid step
    Lb = B * HWp                               # lane block per step
    if accum_taps is None:
        accum_taps = c_ >= 64                  # avoid the 9*c_ concat at real sizes

    # (N, C1, H, W) -> (C1, N*HWp): channels on sublanes, batch folded into lanes.
    x_r = x_nchw.reshape(N, C1, HW)
    if HWp != HW:
        x_r = jnp.pad(x_r, ((0, 0), (0, 0), (0, HWp - HW)))
    x_r = jnp.transpose(x_r, (1, 0, 2)).reshape(C1, N * HWp)

    if mask is None:                           # can be hoisted by the caller
        mask = make_tap_mask(H, W, HWp, B, mxu_dtype)

    # Advisory cost estimate + explicit VMEM budget (v7x: 64 MiB physical).
    wbytes = jnp.dtype(mxu_dtype).itemsize
    flops = 2 * N * HWp * c_ * (C1 + 9 * C2) + 12 * N * HWp * (c_ + C2)
    transcendentals = N * HWp * (c_ + C2)
    bytes_accessed = (4 * N * HWp * (C1 + C2)
                      + wbytes * (c_ * C1 + 9 * c_ * C2 + 9 * Lb)
                      + 4 * (c_ + C2))
    vmem_est = (2 * 4 * Lb * (C1 + C2)                       # double-buffered x/out
                + 2 * wbytes * (c_ * C1 + 9 * c_ * C2 + 9 * Lb)
                + 4 * Lb * (c_ + C2)                         # t / y f32 temps
                + wbytes * Lb * 10 * c_)                     # taps (+ concat)
    vmem_limit = int(min(max(2 * vmem_est, 32 * 1024 * 1024), 56 * 1024 * 1024))

    kernel = functools.partial(_bottleneck_kernel, W=W, add=kp["add"],
                               mxu_dtype=mxu_dtype, accum_taps=accum_taps)
    out = pl.pallas_call(
        kernel,
        out_shape=jax.ShapeDtypeStruct((C2, N * HWp), x_nchw.dtype),
        grid_spec=pltpu.PrefetchScalarGridSpec(
            num_scalar_prefetch=0,
            grid=(num_steps,),
            in_specs=[
                pl.BlockSpec((C1, Lb), lambda s: (0, s)),        # x
                pl.BlockSpec((c_, C1), lambda s: (0, 0)),        # w1 (BN folded)
                pl.BlockSpec((c_, 1), lambda s: (0, 0)),         # shift1
                pl.BlockSpec((C2, 9 * c_), lambda s: (0, 0)),    # w2 (BN folded)
                pl.BlockSpec((C2, 1), lambda s: (0, 0)),         # shift2
                pl.BlockSpec((9, Lb), lambda s: (0, 0)),         # 3x3 border mask
            ],
            out_specs=pl.BlockSpec((C2, Lb), lambda s: (0, s)),
        ),
        compiler_params=pltpu.CompilerParams(
            dimension_semantics=("parallel",),   # v7x: steps across 2 TCs
            vmem_limit_bytes=vmem_limit,
        ),
        cost_estimate=pl.CostEstimate(
            flops=int(flops),
            transcendentals=int(transcendentals),
            bytes_accessed=int(bytes_accessed)),
    )(x_r, kp["w1"], kp["b1"], kp["w2"], kp["b2"], mask)

    # (C2, N*HWp) -> (N, C2, H, W), dropping pad lanes.
    out = out.reshape(C2, N, HWp)[:, :, :HW]
    return jnp.transpose(out, (1, 0, 2)).reshape(N, C2, H, W)


# ---------------------------------------------------------------------------
# Parameter construction (PyTorch-layout), BN/bias folding, pure-JAX reference.
# ---------------------------------------------------------------------------
def make_raw_params(key, c1, c2, shortcut=True, e=0.5):
    c_ = int(c2 * e)
    ks = jax.random.split(key, 6)

    def bn(k, c):
        kg, kb, km, kv = jax.random.split(k, 4)
        return dict(
            gamma=1.0 + 0.1 * jax.random.normal(kg, (c,), jnp.float32),
            beta=0.1 * jax.random.normal(kb, (c,), jnp.float32),
            mean=0.1 * jax.random.normal(km, (c,), jnp.float32),
            var=jnp.abs(jax.random.normal(kv, (c,), jnp.float32)) + 0.5,
        )

    return dict(
        c1=c1, c2=c2, c_=c_, add=bool(shortcut and c1 == c2),
        # Conv uses bias=True (the `bn` ctor arg is the bool True, not a module).
        cv1_w=jax.random.normal(ks[0], (c_, c1, 1, 1), jnp.float32) / math.sqrt(c1),
        cv1_b=0.1 * jax.random.normal(ks[1], (c_,), jnp.float32),
        cv1_bn=bn(ks[2], c_),
        cv2_w=jax.random.normal(ks[3], (c2, c_, 3, 3), jnp.float32) / math.sqrt(9 * c_),
        cv2_b=0.1 * jax.random.normal(ks[4], (c2,), jnp.float32),
        cv2_bn=bn(ks[5], c2),
    )


def fold_params(p, mxu_dtype=jnp.bfloat16):
    """Fold conv bias + eval-mode BN into the matmul weights / per-channel shift.

    Weights are stored in `mxu_dtype` (bf16 feeds the MXU at full rate on
    v6e/v7x and is accepted by v5e's MXU too); shifts stay f32."""
    def fold(w_oihw, bias, bnp):
        scale = bnp["gamma"] / jnp.sqrt(bnp["var"] + EPS)
        shift = bnp["beta"] + (bias - bnp["mean"]) * scale
        return w_oihw * scale[:, None, None, None], shift

    w1f, s1 = fold(p["cv1_w"], p["cv1_b"], p["cv1_bn"])
    w2f, s2 = fold(p["cv2_w"], p["cv2_b"], p["cv2_bn"])
    c_, c2 = p["c_"], p["c2"]
    # 1x1 -> (c_, c1).  3x3 -> columns ordered (ky, kx) major, input-channel
    # minor, matching the in-kernel tap order.
    w1 = w1f[:, :, 0, 0].astype(mxu_dtype)
    w2 = jnp.concatenate(
        [w2f[:, :, ky, kx] for ky in range(3) for kx in range(3)],
        axis=1).astype(mxu_dtype)
    return dict(add=p["add"],
                w1=w1, b1=s1.reshape(c_, 1).astype(jnp.float32),
                w2=w2, b2=s2.reshape(c2, 1).astype(jnp.float32))


def _mish_ref(x):
    return x * jnp.tanh(jnp.logaddexp(x, 0.0))


def _bn_ref(z, bnp):
    sc = (bnp["gamma"] / jnp.sqrt(bnp["var"] + EPS))[None, :, None, None]
    return (z - bnp["mean"][None, :, None, None]) * sc + bnp["beta"][None, :, None, None]


def reference_forward(x, p):
    """Independent pure-JAX (XLA conv) reference of Bottleneck.forward."""
    dn = ("NCHW", "OIHW", "NCHW")
    z = jax.lax.conv_general_dilated(x, p["cv1_w"], (1, 1), "SAME",
                                     dimension_numbers=dn)
    z = _mish_ref(_bn_ref(z + p["cv1_b"][None, :, None, None], p["cv1_bn"]))
    y = jax.lax.conv_general_dilated(z, p["cv2_w"], (1, 1), "SAME",
                                     dimension_numbers=dn)
    y = _mish_ref(_bn_ref(y + p["cv2_b"][None, :, None, None], p["cv2_bn"]))
    return x + y if p["add"] else y


if __name__ == "__main__":
    key = jax.random.PRNGKey(0)
    kx, kw = jax.random.split(key)

    # Bottleneck(c1=16, c2=16, shortcut=True, g=1, e=0.5)  ->  c_ = 8, residual on
    N, C1, H, W = 4, 16, 16, 16
    C2 = 16

    raw = make_raw_params(kw, C1, C2, shortcut=True, e=0.5)
    x = jax.random.normal(kx, (N, C1, H, W), jnp.float32)
    ref = reference_forward(x, raw)

    # Default path: bf16 MXU operands, 2 images folded per grid step, concat taps.
    out = jax.block_until_ready(bottleneck_forward(x, fold_params(raw)))
    assert out.shape == (N, C2, H, W)
    assert bool(jnp.all(jnp.isfinite(out)))
    err_bf16 = float(jnp.max(jnp.abs(out - ref)))
    assert err_bf16 < 8e-2, f"bf16 kernel/reference mismatch: max abs err {err_bf16}"

    # f32 MXU operands + accumulating-matmul tap path (exercises the other variant).
    out32 = jax.block_until_ready(
        bottleneck_forward(x, fold_params(raw, mxu_dtype=jnp.float32),
                           accum_taps=True))
    err_f32 = float(jnp.max(jnp.abs(out32 - ref)))
    assert err_f32 < 2e-3, f"f32 kernel/reference mismatch: max abs err {err_f32}"

    print("KERNEL_OK")
</pallas_src>

<mosaic_0001>
module attributes {stable_mosaic.version = 11 : i64} {
  func.func @_bottleneck_kernel(%arg0: i32, %arg1: memref<16x512xf32, #tpu.memory_space<vmem>>, %arg2: memref<8x16xbf16, #tpu.memory_space<vmem>>, %arg3: memref<8x1xf32, #tpu.memory_space<vmem>>, %arg4: memref<16x72xbf16, #tpu.memory_space<vmem>>, %arg5: memref<16x1xf32, #tpu.memory_space<vmem>>, %arg6: memref<9x512xbf16, #tpu.memory_space<vmem>>, %arg7: memref<16x512xf32, #tpu.memory_space<vmem>>) attributes {dimension_semantics = [#tpu.dimension_semantics<parallel>], iteration_bounds = array<i64: 2>, scalar_prefetch = 0 : i64, scratch_operands = 0 : i64, tpu.core_type = #tpu.core_type<tc>, window_params = [{transform_indices = @transform_0, window_bounds = array<i64: 16, 512>}, {pipeline_mode = #tpu.pipeline_mode<synchronous>, transform_indices = @transform_1, window_bounds = array<i64: 8, 16>}, {pipeline_mode = #tpu.pipeline_mode<synchronous>, transform_indices = @transform_2, window_bounds = array<i64: 8, 1>}, {pipeline_mode = #tpu.pipeline_mode<synchronous>, transform_indices = @transform_3, window_bounds = array<i64: 16, 72>}, {pipeline_mode = #tpu.pipeline_mode<synchronous>, transform_indices = @transform_4, window_bounds = array<i64: 16, 1>}, {pipeline_mode = #tpu.pipeline_mode<synchronous>, transform_indices = @transform_5, window_bounds = array<i64: 9, 512>}, {transform_indices = @transform_6, window_bounds = array<i64: 16, 512>}]} {
    %c0 = arith.constant 0 : index
    %c0_0 = arith.constant 0 : index
    %0 = vector.load %arg1[%c0, %c0_0] : memref<16x512xf32, #tpu.memory_space<vmem>>, vector<16x512xf32>
    %c0_1 = arith.constant 0 : index
    %c0_2 = arith.constant 0 : index
    %1 = vector.load %arg2[%c0_1, %c0_2] : memref<8x16xbf16, #tpu.memory_space<vmem>>, vector<8x16xbf16>
    %2 = arith.truncf %0 : vector<16x512xf32> to vector<16x512xbf16>
    %cst = arith.constant dense<0.000000e+00> : vector<8x512xf32>
    %3 = tpu.matmul %1, %2, %cst {dimension_numbers = #tpu.dot_dimension_numbers<[1], [0], [0], [1], [0, 0, 1, 1], [], []>} : vector<8x16xbf16>, vector<16x512xbf16>, vector<8x512xf32> -> vector<8x512xf32>
    %c0_3 = arith.constant 0 : index
    %c0_4 = arith.constant 0 : index
    %4 = vector.load %arg3[%c0_3, %c0_4] : memref<8x1xf32, #tpu.memory_space<vmem>>, vector<8x1xf32>
    %5 = vector.broadcast %4 : vector<8x1xf32> to vector<8x512xf32>
    %6 = arith.addf %3, %5 : vector<8x512xf32>
    %cst_5 = arith.constant 2.000000e+01 : f32
    %7 = vector.broadcast %cst_5 : f32 to vector<8x512xf32>
    %8 = arith.minimumf %6, %7 : vector<8x512xf32>
    %9 = math.exp %8 : vector<8x512xf32>
    %cst_6 = arith.constant 2.000000e+00 : f32
    %10 = vector.broadcast %cst_6 : f32 to vector<8x512xf32>
    %11 = arith.addf %9, %10 : vector<8x512xf32>
    %12 = arith.mulf %9, %11 : vector<8x512xf32>
    %13 = arith.mulf %6, %12 : vector<8x512xf32>
    %cst_7 = arith.constant 2.000000e+00 : f32
    %14 = vector.broadcast %cst_7 : f32 to vector<8x512xf32>
    %15 = arith.addf %12, %14 : vector<8x512xf32>
    %16 = tpu.reciprocal %15 : vector<8x512xf32> -> vector<8x512xf32>
    %17 = arith.mulf %13, %16 : vector<8x512xf32>
    %c0_8 = arith.constant 0 : index
    %c0_9 = arith.constant 0 : index
    %18 = vector.load %arg6[%c0_8, %c0_9] : memref<9x512xbf16, #tpu.memory_space<vmem>>, vector<9x512xbf16>
    %c17_i32 = arith.constant 17 : i32
    %19 = tpu.dynamic_rotate %17 by %c17_i32 dim 1 : vector<8x512xf32>, i32 -> vector<8x512xf32>
    %20 = vector.extract_strided_slice %18 {offsets = [0, 0], sizes = [1, 512], strides = [1, 1]} : vector<9x512xbf16> to vector<1x512xbf16>
    %21 = arith.extf %20 : vector<1x512xbf16> to vector<1x512xf32>
    %22 = vector.broadcast %21 : vector<1x512xf32> to vector<8x512xf32>
    %23 = arith.mulf %19, %22 : vector<8x512xf32>
    %c16_i32 = arith.constant 16 : i32
    %24 = tpu.dynamic_rotate %17 by %c16_i32 dim 1 : vector<8x512xf32>, i32 -> vector<8x512xf32>
    %25 = vector.extract_strided_slice %18 {offsets = [1, 0], sizes = [1, 512], strides = [1, 1]} : vector<9x512xbf16> to vector<1x512xbf16>
    %26 = arith.extf %25 : vector<1x512xbf16> to vector<1x512xf32>
    %27 = vector.broadcast %26 : vector<1x512xf32> to vector<8x512xf32>
    %28 = arith.mulf %24, %27 : vector<8x512xf32>
    %c15_i32 = arith.constant 15 : i32
    %29 = tpu.dynamic_rotate %17 by %c15_i32 dim 1 : vector<8x512xf32>, i32 -> vector<8x512xf32>
    %30 = vector.extract_strided_slice %18 {offsets = [2, 0], sizes = [1, 512], strides = [1, 1]} : vector<9x512xbf16> to vector<1x512xbf16>
    %31 = arith.extf %30 : vector<1x512xbf16> to vector<1x512xf32>
    %32 = vector.broadcast %31 : vector<1x512xf32> to vector<8x512xf32>
    %33 = arith.mulf %29, %32 : vector<8x512xf32>
    %c1_i32 = arith.constant 1 : i32
    %34 = tpu.dynamic_rotate %17 by %c1_i32 dim 1 : vector<8x512xf32>, i32 -> vector<8x512xf32>
    %35 = vector.extract_strided_slice %18 {offsets = [3, 0], sizes = [1, 512], strides = [1, 1]} : vector<9x512xbf16> to vector<1x512xbf16>
    %36 = arith.extf %35 : vector<1x512xbf16> to vector<1x512xf32>
    %37 = vector.broadcast %36 : vector<1x512xf32> to vector<8x512xf32>
    %38 = arith.mulf %34, %37 : vector<8x512xf32>
    %c511_i32 = arith.constant 511 : i32
    %39 = tpu.dynamic_rotate %17 by %c511_i32 dim 1 : vector<8x512xf32>, i32 -> vector<8x512xf32>
    %40 = vector.extract_strided_slice %18 {offsets = [5, 0], sizes = [1, 512], strides = [1, 1]} : vector<9x512xbf16> to vector<1x512xbf16>
    %41 = arith.extf %40 : vector<1x512xbf16> to vector<1x512xf32>
    %42 = vector.broadcast %41 : vector<1x512xf32> to vector<8x512xf32>
    %43 = arith.mulf %39, %42 : vector<8x512xf32>
    %c497_i32 = arith.constant 497 : i32
    %44 = tpu.dynamic_rotate %17 by %c497_i32 dim 1 : vector<8x512xf32>, i32 -> vector<8x512xf32>
    %45 = vector.extract_strided_slice %18 {offsets = [6, 0], sizes = [1, 512], strides = [1, 1]} : vector<9x512xbf16> to vector<1x512xbf16>
    %46 = arith.extf %45 : vector<1x512xbf16> to vector<1x512xf32>
    %47 = vector.broadcast %46 : vector<1x512xf32> to vector<8x512xf32>
    %48 = arith.mulf %44, %47 : vector<8x512xf32>
    %c496_i32 = arith.constant 496 : i32
    %49 = tpu.dynamic_rotate %17 by %c496_i32 dim 1 : vector<8x512xf32>, i32 -> vector<8x512xf32>
    %50 = vector.extract_strided_slice %18 {offsets = [7, 0], sizes = [1, 512], strides = [1, 1]} : vector<9x512xbf16> to vector<1x512xbf16>
    %51 = arith.extf %50 : vector<1x512xbf16> to vector<1x512xf32>
    %52 = vector.broadcast %51 : vector<1x512xf32> to vector<8x512xf32>
    %53 = arith.mulf %49, %52 : vector<8x512xf32>
    %c495_i32 = arith.constant 495 : i32
    %54 = tpu.dynamic_rotate %17 by %c495_i32 dim 1 : vector<8x512xf32>, i32 -> vector<8x512xf32>
    %55 = vector.extract_strided_slice %18 {offsets = [8, 0], sizes = [1, 512], strides = [1, 1]} : vector<9x512xbf16> to vector<1x512xbf16>
    %56 = arith.extf %55 : vector<1x512xbf16> to vector<1x512xf32>
    %57 = vector.broadcast %56 : vector<1x512xf32> to vector<8x512xf32>
    %58 = arith.mulf %54, %57 : vector<8x512xf32>
    %59 = tpu.concatenate %23, %28, %33, %38, %17, %43, %48, %53, %58 in 0 : vector<8x512xf32>, vector<8x512xf32>, vector<8x512xf32>, vector<8x512xf32>, vector<8x512xf32>, vector<8x512xf32>, vector<8x512xf32>, vector<8x512xf32>, vector<8x512xf32> -> vector<72x512xf32>
    %60 = arith.truncf %59 : vector<72x512xf32> to vector<72x512xbf16>
    %c0_10 = arith.constant 0 : index
    %c0_11 = arith.constant 0 : index
    %61 = vector.load %arg4[%c0_10, %c0_11] : memref<16x72xbf16, #tpu.memory_space<vmem>>, vector<16x72xbf16>
    %cst_12 = arith.constant dense<0.000000e+00> : vector<16x512xf32>
    %62 = tpu.matmul %61, %60, %cst_12 {dimension_numbers = #tpu.dot_dimension_numbers<[1], [0], [0], [1], [0, 0, 1, 1], [], []>} : vector<16x72xbf16>, vector<72x512xbf16>, vector<16x512xf32> -> vector<16x512xf32>
    %c0_13 = arith.constant 0 : index
    %c0_14 = arith.constant 0 : index
    %63 = vector.load %arg5[%c0_13, %c0_14] : memref<16x1xf32, #tpu.memory_space<vmem>>, vector<16x1xf32>
    %64 = vector.broadcast %63 : vector<16x1xf32> to vector<16x512xf32>
    %65 = arith.addf %62, %64 : vector<16x512xf32>
    %cst_15 = arith.constant 2.000000e+01 : f32
    %66 = vector.broadcast %cst_15 : f32 to vector<16x512xf32>
    %67 = arith.minimumf %65, %66 : vector<16x512xf32>
    %68 = math.exp %67 : vector<16x512xf32>
    %cst_16 = arith.constant 2.000000e+00 : f32
    %69 = vector.broadcast %cst_16 : f32 to vector<16x512xf32>
    %70 = arith.addf %68, %69 : vector<16x512xf32>
    %71 = arith.mulf %68, %70 : vector<16x512xf32>
    %72 = arith.mulf %65, %71 : vector<16x512xf32>
    %cst_17 = arith.constant 2.000000e+00 : f32
    %73 = vector.broadcast %cst_17 : f32 to vector<16x512xf32>
    %74 = arith.addf %71, %73 : vector<16x512xf32>
    %75 = tpu.reciprocal %74 : vector<16x512xf32> -> vector<16x512xf32>
    %76 = arith.mulf %72, %75 : vector<16x512xf32>
    %77 = arith.addf %76, %0 : vector<16x512xf32>
    %c0_18 = arith.constant 0 : index
    %c0_19 = arith.constant 0 : index
    %78 = vector.load %arg7[%c0_18, %c0_19] : memref<16x512xf32, #tpu.memory_space<vmem>>, vector<16x512xf32>
    tpu.vector_store %arg7[%c0_18, %c0_19], %77 {strides = array<i32>} : memref<16x512xf32, #tpu.memory_space<vmem>>, vector<16x512xf32>,
    return
  }
  func.func @transform_0(%arg0: i32) -> (i32, i32) {
    %c0_i32 = arith.constant 0 : i32
    %c0_i32_0 = arith.constant 0 : i32
    return %c0_i32, %arg0 : i32, i32
  }
  func.func @transform_1(%arg0: i32) -> (i32, i32) {
    %c0_i32 = arith.constant 0 : i32
    %c0_i32_0 = arith.constant 0 : i32
    %c0_i32_1 = arith.constant 0 : i32
    return %c0_i32, %c0_i32_0 : i32, i32
  }
  func.func @transform_2(%arg0: i32) -> (i32, i32) {
    %c0_i32 = arith.constant 0 : i32
    %c0_i32_0 = arith.constant 0 : i32
    %c0_i32_1 = arith.constant 0 : i32
    return %c0_i32, %c0_i32_0 : i32, i32
  }
  func.func @transform_3(%arg0: i32) -> (i32, i32) {
    %c0_i32 = arith.constant 0 : i32
    %c0_i32_0 = arith.constant 0 : i32
    %c0_i32_1 = arith.constant 0 : i32
    return %c0_i32, %c0_i32_0 : i32, i32
  }
  func.func @transform_4(%arg0: i32) -> (i32, i32) {
    %c0_i32 = arith.constant 0 : i32
    %c0_i32_0 = arith.constant 0 : i32
    %c0_i32_1 = arith.constant 0 : i32
    return %c0_i32, %c0_i32_0 : i32, i32
  }
  func.func @transform_5(%arg0: i32) -> (i32, i32) {
    %c0_i32 = arith.constant 0 : i32
    %c0_i32_0 = arith.constant 0 : i32
    %c0_i32_1 = arith.constant 0 : i32
    return %c0_i32, %c0_i32_0 : i32, i32
  }
  func.func @transform_6(%arg0: i32) -> (i32, i32) {
    %c0_i32 = arith.constant 0 : i32
    %c0_i32_0 = arith.constant 0 : i32
    return %c0_i32, %arg0 : i32, i32
  }
}

</mosaic_0001>

<llo_original>
// kernel: tpu_custom_call.1
$region0: #{tpu_custom_call.1}
  #allocation0 [shape = 'u32[]', space=smem, size = 0x4, offset = 0x4, fixed_abs, tag = 'smem constant byte address 0x4 - core index']
  #allocation1 [shape = 'u32[144,128]{1,0:T(1,128)}', space=vmem, size = 0x12000, scoped, tag = 'internal scratch']
  %s0 = inlined_call_operand.hbm [shape: f32[16,1024], index: 0, kind: input, shape index: {}]
  %s1 = inlined_call_operand.vmem [shape: bf16[8,16], index: 1, kind: input, shape index: {}]
  %s2 = inlined_call_operand.vmem [shape: f32[8,1], index: 2, kind: input, shape index: {}]
  %s3 = inlined_call_operand.vmem [shape: bf16[16,72], index: 3, kind: input, shape index: {}]
  %s4 = inlined_call_operand.vmem [shape: f32[16,1], index: 4, kind: input, shape index: {}]
  %s5 = inlined_call_operand.vmem [shape: bf16[9,512], index: 5, kind: input, shape index: {}]
  %s6 = inlined_call_operand.hbm [shape: f32[16,1024], index: 6, kind: output, shape index: {}]
  %s7 = sld [smem:[#allocation0]]
  $region61: #{tpu_custom_call.1} parent=0
    _
  %s9 = ssub.s32 1, %s7
  %s10 = scalar_select 0, %s9, %s7
  $region1: #{tpu_custom_call.1} parent=0
    #allocation2 [shape = 'u8[65536]{0}', space=vmem, size = 0x10000, scoped, tag = 'input window, operand 0']
    #allocation3 [shape = 's32[2]{0}', space=sflag, size = 0x8, scoped, tag = 'scoped memory for tpu_custom_call.1']
    #allocation4 [shape = 's32[2]{0}', space=sflag, size = 0x8, scoped, tag = 'scoped memory for tpu_custom_call.1']
    #allocation5 [shape = 'u8[65536]{0}', space=vmem, size = 0x10000, scoped, tag = 'output window, operand 0']
    %11 = vsyncpa [#allocation3], 0
    %s12 = scalar_lea.sflag [#allocation3], 1
    %13 = vsyncpa %s12, 0
    %14 = vsyncpa [#allocation4], 0
    %s15 = scalar_lea.sflag [#allocation4], 1
    %16 = vsyncpa %s15, 0
    loop: start=0, step=1, limit=4
    $region2: #{tpu_custom_call.1} parent=1 // loop_pre_header
      _
    $region3: #{tpu_custom_call.1} parent=1 // loop_header
      %s18 = sphi 0, %s22
      %p19 = scmp.ge.s32.totalorder %s18, 4
      %s28 = sphi 0, %s30
      %s31 = sphi 0, %s28
      %s32 = sphi 0, %s31
      %s48 = sphi 0, %s32
      %s52 = sphi 0, %s52
      %s54 = sphi 0, %s52
      %s55 = sphi 0, %s54
      %s69 = sphi 0, %s55
      %s73 = sphi 0, %s73
      %s75 = sphi 0, %s73
      %s76 = sphi 0, %s75
      %s90 = sphi 0, %s76
      %s94 = sphi 0, %s94
      %s96 = sphi 0, %s94
      %s97 = sphi 0, %s96
      %s111 = sphi 0, %s97
      %s115 = sphi 0, %s115
      %s117 = sphi 0, %s115
      %s118 = sphi 0, %s117
      %s132 = sphi 0, %s118
      %s136 = sphi 0, %s136
      %s138 = sphi 0, %s136
      %s139 = sphi 0, %s138
      %s153 = sphi 0, %s139
      %s159 = sphi 0, %s161
      %s162 = sphi 0, %s159
      %s163 = sphi 0, %s162
      %s179 = sphi 0, %s163
    $region4: #{tpu_custom_call.1} parent=1 // loop_header_branch
      %21 = sbr.rel (%p19) target = $region8
    $region5: #{tpu_custom_call.1} parent=1 // loop_body
      %s23 = ssub.s32 %s18, 1
      %s24 = ssub.s32 %s18, 2
      %s25 = sadd.s32 %s18, 1
      %s26 = ssub.s32 %s18, %s25
      %p27 = scmp.eq.s32.totalorder %s26, 0
      %s29 = sadd.s32 %s28, 1
      %s30 = scalar_select %p27, %s28, %s29
      %p33 = pneg %p27
      %p34 = scmp.eq.s32.totalorder %s18, 1
      %p35 = por %p33, %p34
      %p36 = scmp.ne.s32.totalorder %s28, %s31
      %p37 = scmp.eq.s32.totalorder %s18, 0
      %p38 = por %p36, %p37
      %p39 = scmp.ne.s32.totalorder %s28, %s31
      %p40 = scmp.eq.s32.totalorder %s23, 1
      %p41 = por %p39, %p40
      %p42 = scmp.ne.s32.totalorder %s31, %s32
      %p43 = scmp.eq.s32.totalorder %s23, 0
      %p44 = por %p42, %p43
      %p45 = scmp.ne.s32.totalorder %s31, %s32
      %p46 = scmp.eq.s32.totalorder %s24, 1
      %p47 = por %p45, %p46
      %p49 = scmp.ne.s32.totalorder %s32, %s48
      %p50 = scmp.eq.s32.totalorder %s24, 0
      %p51 = por %p49, %p50
      %s53 = sadd.s32 %s52, 1
      %p56 = scmp.eq.s32.totalorder %s18, 1
      %p57 = scmp.ne.s32.totalorder %s52, %s54
      %p58 = scmp.eq.s32.totalorder %s18, 0
      %p59 = por %p57, %p58
      %p60 = scmp.ne.s32.totalorder %s52, %s54
      %p61 = scmp.eq.s32.totalorder %s23, 1
      %p62 = por %p60, %p61
      %p63 = scmp.ne.s32.totalorder %s54, %s55
      %p64 = scmp.eq.s32.totalorder %s23, 0
      %p65 = por %p63, %p64
      %p66 = scmp.ne.s32.totalorder %s54, %s55
      %p67 = scmp.eq.s32.totalorder %s24, 1
      %p68 = por %p66, %p67
      %p70 = scmp.ne.s32.totalorder %s55, %s69
      %p71 = scmp.eq.s32.totalorder %s24, 0
      %p72 = por %p70, %p71
      %s74 = sadd.s32 %s73, 1
      %p77 = scmp.eq.s32.totalorder %s18, 1
      %p78 = scmp.ne.s32.totalorder %s73, %s75
      %p79 = scmp.eq.s32.totalorder %s18, 0
      %p80 = por %p78, %p79
      %p81 = scmp.ne.s32.totalorder %s73, %s75
      %p82 = scmp.eq.s32.totalorder %s23, 1
      %p83 = por %p81, %p82
      %p84 = scmp.ne.s32.totalorder %s75, %s76
      %p85 = scmp.eq.s32.totalorder %s23, 0
      %p86 = por %p84, %p85
      %p87 = scmp.ne.s32.totalorder %s75, %s76
      %p88 = scmp.eq.s32.totalorder %s24, 1
      %p89 = por %p87, %p88
      %p91 = scmp.ne.s32.totalorder %s76, %s90
      %p92 = scmp.eq.s32.totalorder %s24, 0
      %p93 = por %p91, %p92
      %s95 = sadd.s32 %s94, 1
      %p98 = scmp.eq.s32.totalorder %s18, 1
      %p99 = scmp.ne.s32.totalorder %s94, %s96
      %p100 = scmp.eq.s32.totalorder %s18, 0
      %p101 = por %p99, %p100
      %p102 = scmp.ne.s32.totalorder %s94, %s96
      %p103 = scmp.eq.s32.totalorder %s23, 1
      %p104 = por %p102, %p103
      %p105 = scmp.ne.s32.totalorder %s96, %s97
      %p106 = scmp.eq.s32.totalorder %s23, 0
      %p107 = por %p105, %p106
      %p108 = scmp.ne.s32.totalorder %s96, %s97
      %p109 = scmp.eq.s32.totalorder %s24, 1
      %p110 = por %p108, %p109
      %p112 = scmp.ne.s32.totalorder %s97, %s111
      %p113 = scmp.eq.s32.totalorder %s24, 0
      %p114 = por %p112, %p113
      %s116 = sadd.s32 %s115, 1
      %p119 = scmp.eq.s32.totalorder %s18, 1
      %p120 = scmp.ne.s32.totalorder %s115, %s117
      %p121 = scmp.eq.s32.totalorder %s18, 0
      %p122 = por %p120, %p121
      %p123 = scmp.ne.s32.totalorder %s115, %s117
      %p124 = scmp.eq.s32.totalorder %s23, 1
      %p125 = por %p123, %p124
      %p126 = scmp.ne.s32.totalorder %s117, %s118
      %p127 = scmp.eq.s32.totalorder %s23, 0
      %p128 = por %p126, %p127
      %p129 = scmp.ne.s32.totalorder %s117, %s118
      %p130 = scmp.eq.s32.totalorder %s24, 1
      %p131 = por %p129, %p130
      %p133 = scmp.ne.s32.totalorder %s118, %s132
      %p134 = scmp.eq.s32.totalorder %s24, 0
      %p135 = por %p133, %p134
      %s137 = sadd.s32 %s136, 1
      %p140 = scmp.eq.s32.totalorder %s18, 1
      %p141 = scmp.ne.s32.totalorder %s136, %s138
      %p142 = scmp.eq.s32.totalorder %s18, 0
      %p143 = por %p141, %p142
      %p144 = scmp.ne.s32.totalorder %s136, %s138
      %p145 = scmp.eq.s32.totalorder %s23, 1
      %p146 = por %p144, %p145
      %p147 = scmp.ne.s32.totalorder %s138, %s139
      %p148 = scmp.eq.s32.totalorder %s23, 0
      %p149 = por %p147, %p148
      %p150 = scmp.ne.s32.totalorder %s138, %s139
      %p151 = scmp.eq.s32.totalorder %s24, 1
      %p152 = por %p150, %p151
      %p154 = scmp.ne.s32.totalorder %s139, %s153
      %p155 = scmp.eq.s32.totalorder %s24, 0
      %p156 = por %p154, %p155
      %s157 = ssub.s32 %s18, %s25
      %p158 = scmp.eq.s32.totalorder %s157, 0
      %s160 = sadd.s32 %s159, 1
      %s161 = scalar_select %p158, %s159, %s160
      %p164 = pneg %p158
      %p165 = scmp.eq.s32.totalorder %s18, 1
      %p166 = por %p164, %p165
      %p167 = scmp.ne.s32.totalorder %s159, %s162
      %p168 = scmp.eq.s32.totalorder %s18, 0
      %p169 = por %p167, %p168
      %p170 = scmp.ne.s32.totalorder %s159, %s162
      %p171 = scmp.eq.s32.totalorder %s23, 1
      %p172 = por %p170, %p171
      %p173 = scmp.ne.s32.totalorder %s162, %s163
      %p174 = scmp.eq.s32.totalorder %s23, 0
      %p175 = por %p173, %p174
      %p176 = scmp.ne.s32.totalorder %s162, %s163
      %p177 = scmp.eq.s32.totalorder %s24, 1
      %p178 = por %p176, %p177
      %p180 = scmp.ne.s32.totalorder %s163, %s179
      %p181 = scmp.eq.s32.totalorder %s24, 0
      %p182 = por %p180, %p181
      %p183 = scmp.le.s32.totalorder 1, %s18
      %p184 = scmp.lt.s32.totalorder %s18, 3
      %p185 = pnand %p183, %p184
      %p186 = pneg %p185
      // Predicated region
      $region9: #{tpu_custom_call.1} parent=5 // pred_check
        _
      $region10: #{tpu_custom_call.1} parent=5 // pred_check_branch
        %188 = sbr.rel (%p185) target = $region12
      $region11: #{tpu_custom_call.1} parent=5 // pred_region
        %s189 = ssub.s32 %s18, 1
        // Predicated region
        $region13: #{tpu_custom_call.1} parent=11 // pred_check
          %p190 = pneg %p65
        $region14: #{tpu_custom_call.1} parent=11 // pred_check_branch
          %192 = sbr.rel (%p190) target = $region16
        $region15: #{tpu_custom_call.1} parent=11 // pred_region
          _
        $region16: #{tpu_custom_call.1} parent=11 // pred_fallthru
          _
        // Predicated region
        $region17: #{tpu_custom_call.1} parent=11 // pred_check
          %p193 = pneg %p86
        $region18: #{tpu_custom_call.1} parent=11 // pred_check_branch
          %195 = sbr.rel (%p193) target = $region20
        $region19: #{tpu_custom_call.1} parent=11 // pred_region
          _
        $region20: #{tpu_custom_call.1} parent=11 // pred_fallthru
          _
        // Predicated region
        $region21: #{tpu_custom_call.1} parent=11 // pred_check
          %p196 = pneg %p107
        $region22: #{tpu_custom_call.1} parent=11 // pred_check_branch
          %198 = sbr.rel (%p196) target = $region24
        $region23: #{tpu_custom_call.1} parent=11 // pred_region
          _
        $region24: #{tpu_custom_call.1} parent=11 // pred_fallthru
          _
        // Predicated region
        $region25: #{tpu_custom_call.1} parent=11 // pred_check
          %p199 = pneg %p128
        $region26: #{tpu_custom_call.1} parent=11 // pred_check_branch
          %201 = sbr.rel (%p199) target = $region28
        $region27: #{tpu_custom_call.1} parent=11 // pred_region
          _
        $region28: #{tpu_custom_call.1} parent=11 // pred_fallthru
          _
        // Predicated region
        $region29: #{tpu_custom_call.1} parent=11 // pred_check
          %p202 = pneg %p149
        $region30: #{tpu_custom_call.1} parent=11 // pred_check_branch
          %204 = sbr.rel (%p202) target = $region32
        $region31: #{tpu_custom_call.1} parent=11 // pred_region
          _
        $region32: #{tpu_custom_call.1} parent=11 // pred_fallthru
          _
      $region12: #{tpu_custom_call.1} parent=5 // pred_fallthru
        _
      %p205 = scmp.lt.s32.totalorder %s18, 2
      // Predicated region
      $region33: #{tpu_custom_call.1} parent=5 // pred_check
        %p206 = pneg %p205
      $region34: #{tpu_custom_call.1} parent=5 // pred_check_branch
        %208 = sbr.rel (%p206) target = $region36
      $region35: #{tpu_custom_call.1} parent=5 // pred_region
        // Predicated region
        $region37: #{tpu_custom_call.1} parent=35 // pred_check
          %p209 = pneg %p38
        $region38: #{tpu_custom_call.1} parent=35 // pred_check_branch
          %211 = sbr.rel (%p209) target = $region40
        $region39: #{tpu_custom_call.1} parent=35 // pred_region
          %s212 = sand.u32 %s28, 1
          %s213 = scalar_lea.sflag [#allocation3], %s212
          %s214 = sand.u32 %s28, 1
          %s215 = smul.addr %s214, 64
          %s216 = scalar_lea.vmem [#allocation2], %s215
          %s217 = smul.u32 4, %s18
          %s219 = ssub.s32 1024, 1024
          %220 = vsyncadd %s213, %s219
          %s221 = smul.addr %s217, 128
          %s222 = scalar_lea.hbm %s0, %s221
          %s223 = sshll.u32 %s216, 4
          %s224 = int_to_ptr.vmem [resolvable:$true] %s223
          %229 = dma.hbm_to_vmem [thread:$0]  %s222, 1024, %s224, %s213, 1024, 512, 32
        $region40: #{tpu_custom_call.1} parent=35 // pred_fallthru
          _
      $region36: #{tpu_custom_call.1} parent=5 // pred_fallthru
        _
      %p230 = scmp.le.s32.totalorder 1, %s18
      %p231 = scmp.lt.s32.totalorder %s18, 3
      %p232 = pnand %p230, %p231
      %p233 = pneg %p232
      // Predicated region
      $region41: #{tpu_custom_call.1} parent=5 // pred_check
        _
      $region42: #{tpu_custom_call.1} parent=5 // pred_check_branch
        %235 = sbr.rel (%p232) target = $region44
      $region43: #{tpu_custom_call.1} parent=5 // pred_region
        %s236 = ssub.s32 %s18, 1
        %s237 = sand.u32 %s31, 1
        %s238 = scalar_lea.sflag [#allocation3], %s237
        %s239 = sand.u32 %s31, 1
        %s240 = smul.addr %s239, 64
        %s241 = scalar_lea.vmem [#allocation2], %s240
        // Predicated region
        $region45: #{tpu_custom_call.1} parent=43 // pred_check
          %p242 = pneg %p44
        $region46: #{tpu_custom_call.1} parent=43 // pred_check_branch
          %244 = sbr.rel (%p242) target = $region48
        $region47: #{tpu_custom_call.1} parent=43 // pred_region
          %245 = dma.done %s238, 1024
        $region48: #{tpu_custom_call.1} parent=43 // pred_fallthru
          _
        %s246 = sand.u32 %s31, 1
        %s247 = scalar_lea.sflag [#allocation3], %s246
        %s248 = sand.u32 %s31, 1
        %s249 = smul.addr %s248, 64
        %s250 = scalar_lea.vmem [#allocation2], %s249
        %p251 = pneg %p44
        %p252 = pneg %p41
        %p253 = pneg %p65
        %p254 = pneg %p62
        %p255 = pneg %p86
        %p256 = pneg %p83
        %p257 = pneg %p107
        %p258 = pneg %p104
        %p259 = pneg %p128
        %p260 = pneg %p125
        %p261 = pneg %p149
        %p262 = pneg %p146
        %p263 = pneg %p175
        %p264 = pneg %p172
        %s265 = sand.u32 %s162, 1
        %s266 = scalar_lea.sflag [#allocation4], %s265
        %s267 = sand.u32 %s162, 1
        %s268 = smul.addr %s267, 64
        %s269 = scalar_lea.vmem [#allocation5], %s268
        %s270 = smul.u32 4, %s23
        %s271 = smul.u32 4, %s23
        %v273 = vld [vmem:[%s241] sm:$0xff]
        %v274 = vld [vmem:[%s241 + $0x8] sm:$0xff]
        %v275 = vld [vmem:[%s241 + $0x10] sm:$0xff]
        %v276 = vld [vmem:[%s241 + $0x18] sm:$0xff]
        %v277 = vld [vmem:[%s241 + $0x20] sm:$0xff]
        %v278 = vld [vmem:[%s241 + $0x28] sm:$0xff]
        %v279 = vld [vmem:[%s241 + $0x30] sm:$0xff]
        %v280 = vld [vmem:[%s241 + $0x38] sm:$0xff]
        %v281 = vld [vmem:[%s1] sm:$0xf]
        %v282 = vpack.c.bf16 %v277, %v273
        %v283 = vpack.c.bf16 %v278, %v274
        %v284 = vpack.c.bf16 %v279, %v275
        %v285 = vpack.c.bf16 %v280, %v276
        %v286 = vld [vmem:[%s2] sm:$0xff]
        %288 = vset.pattern.permute.xlu0 0
        %289 = vperm.xlu0 %288, %v286
        %v290 = vpop.permute.xlu0 %289
        %vm292 = vcmask 130048
        %v294 = vsel %vm292, %v281, 0
        %296 = vmatprep.subr.bf16.mxu0 %v283
        %297 = vmatpush1.bf16.msra.mxu0 %v282
        %298 = vmatprep.subr.bf16.mxu0 0
        %299 = vmatpush1.bf16.msra.mxu0 0
        %300 = vmatprep.subr.bf16.mxu0 0
        %301 = vmatpush1.bf16.msra.mxu0 0
        %302 = vmatprep.subr.bf16.mxu0 0
        %303 = vmatpush1.bf16.msra.mxu0 0
        %304 = vmatprep.subr.bf16.mxu0 0
        %305 = vmatpush1.bf16.msra.mxu0 0
        %306 = vmatprep.subr.bf16.mxu0 0
        %307 = vmatpush1.bf16.msra.mxu0 0
        %308 = vmatprep.subr.bf16.mxu0 0
        %309 = vmatpush1.bf16.msra.mxu0 0
        %310 = vmatprep.subr.bf16.mxu0 0
        %311 = vmatpush1.bf16.msra.mxu0 0
        %312 = vmatprep.subr.bf16.mxu0 0
        %313 = vmatpush1.bf16.msra.mxu0 0
        %314 = vmatprep.subr.bf16.mxu0 0
        %315 = vmatpush1.bf16.msra.mxu0 0
        %316 = vmatprep.subr.bf16.mxu0 0
        %317 = vmatpush1.bf16.msra.mxu0 0
        %318 = vmatprep.subr.bf16.mxu0 0
        %319 = vmatpush1.bf16.msra.mxu0 0
        %320 = vmatprep.subr.bf16.mxu0 0
        %321 = vmatpush1.bf16.msra.mxu0 0
        %322 = vmatprep.subr.bf16.mxu0 0
        %323 = vmatpush1.bf16.msra.mxu0 0
        %324 = vmatprep.subr.bf16.mxu0 0
        %325 = vmatpush1.bf16.msra.mxu0 0
        %326 = vmatprep.subr.bf16.mxu0 0
        %327 = vmatpush1.bf16.msra.mxu0 0
        %328 = vmatprep.mubr.bf16.mxu0 0
        %329 = vmatmul.mubr.bf16.gmra.mrb[0].mxu0 %v294
        %v330 = vpop.f32.mrb[0].mxu0
        %v331 = vadd.f32 %v290, %v330
        %v332 = vpop.f32.mrb[0].mxu0
        %v333 = vadd.f32 %v290, %v332
        %v334 = vpop.f32.mrb[0].mxu0
        %v335 = vpop.f32.mrb[0].mxu0
        %336 = vdwg.mxu0
        %337 = vmatprep.subr.bf16.mxu0 %v285
        %338 = vmatpush1.bf16.msra.mxu0 %v284
        %339 = vmatprep.subr.bf16.mxu0 0
        %340 = vmatpush1.bf16.msra.mxu0 0
        %341 = vmatprep.subr.bf16.mxu0 0
        %342 = vmatpush1.bf16.msra.mxu0 0
        %343 = vmatprep.subr.bf16.mxu0 0
        %344 = vmatpush1.bf16.msra.mxu0 0
        %345 = vmatprep.subr.bf16.mxu0 0
        %346 = vmatpush1.bf16.msra.mxu0 0
        %347 = vmatprep.subr.bf16.mxu0 0
        %348 = vmatpush1.bf16.msra.mxu0 0
        %349 = vmatprep.subr.bf16.mxu0 0
        %350 = vmatpush1.bf16.msra.mxu0 0
        %351 = vmatprep.subr.bf16.mxu0 0
        %352 = vmatpush1.bf16.msra.mxu0 0
        %353 = vmatprep.subr.bf16.mxu0 0
        %354 = vmatpush1.bf16.msra.mxu0 0
        %355 = vmatprep.subr.bf16.mxu0 0
        %356 = vmatpush1.bf16.msra.mxu0 0
        %357 = vmatprep.subr.bf16.mxu0 0
        %358 = vmatpush1.bf16.msra.mxu0 0
        %359 = vmatprep.subr.bf16.mxu0 0
        %360 = vmatpush1.bf16.msra.mxu0 0
        %361 = vmatprep.subr.bf16.mxu0 0
        %362 = vmatpush1.bf16.msra.mxu0 0
        %363 = vmatprep.subr.bf16.mxu0 0
        %364 = vmatpush1.bf16.msra.mxu0 0
        %365 = vmatprep.subr.bf16.mxu0 0
        %366 = vmatpush1.bf16.msra.mxu0 0
        %367 = vmatprep.subr.bf16.mxu0 0
        %368 = vmatpush1.bf16.msra.mxu0 0
        %369 = vmatprep.mubr.bf16.mxu0 0
        %370 = vmatmul.mubr.bf16.gmra.mrb[0].mxu0 %v294
        %v371 = vpop.f32.mrb[0].mxu0
        %v372 = vadd.f32 %v290, %v371
        %v373 = vpop.f32.mrb[0].mxu0
        %v374 = vadd.f32 %v290, %v373
        %v375 = vpop.f32.mrb[0].mxu0
        %v376 = vpop.f32.mrb[0].mxu0
        %377 = vdwg.mxu0
        %v378 = vmin.f32 %v331, 20.0
        %v379 = vmin.f32 %v333, 20.0
        %v380 = vmin.f32 %v372, 20.0
        %v381 = vmin.f32 %v374, 20.0
        %v382 = vmul.f32 %v378, 1.442695
        %v383 = vpow.pop %v382
        %v384 = vmul.f32 %v379, 1.442695
        %v385 = vpow.pop %v384
        %v386 = vmul.f32 %v380, 1.442695
        %v387 = vpow.pop %v386
        %v388 = vmul.f32 %v381, 1.442695
        %v389 = vpow.pop %v388
        %v390 = vadd.f32 %v383, 2.0
        %v391 = vadd.f32 %v385, 2.0
        %v392 = vadd.f32 %v387, 2.0
        %v393 = vadd.f32 %v389, 2.0
        %v394 = vmul.f32 %v383, %v390
        %v395 = vmul.f32 %v385, %v391
        %v396 = vmul.f32 %v387, %v392
        %v397 = vmul.f32 %v389, %v393
        %v398 = vmul.f32 %v331, %v394
        %v399 = vmul.f32 %v333, %v395
        %v400 = vmul.f32 %v372, %v396
        %v401 = vmul.f32 %v374, %v397
        %v402 = vadd.f32 %v394, 2.0
        %v403 = vadd.f32 %v395, 2.0
        %v404 = vadd.f32 %v396, 2.0
        %v405 = vadd.f32 %v397, 2.0
        %v406 = vrcp.pop %v402
        %v407 = vrcp.pop %v403
        %v408 = vrcp.pop %v404
        %v409 = vrcp.pop %v405
        %v410 = vmul.f32 %v398, %v406
        %v411 = vmul.f32 %v399, %v407
        %v412 = vmul.f32 %v400, %v408
        %v413 = vmul.f32 %v401, %v409
        %v414 = vld [vmem:[%s5] sm:$0xff]
        %v415 = vld [vmem:[%s5 + $0x8] sm:$0xff]
        %v416 = vld [vmem:[%s5 + $0x10] sm:$0x11]
        %v417 = vld [vmem:[%s5 + $0x18] sm:$0x11]
        %418 = vrot.lane.b32.xlu0 %v410, 17
        %v419 = vpop.permute.xlu0 %418
        %420 = vrot.lane.b32.xlu0 %v411, 17
        %v421 = vpop.permute.xlu0 %420
        %422 = vrot.lane.b32.xlu0 %v412, 17
        %v423 = vpop.permute.xlu0 %422
        %424 = vrot.lane.b32.xlu0 %v413, 17
        %v425 = vpop.permute.xlu0 %424
        %v426 = vlaneseq
        %v427 = vand.u32 %v426, 127
        %vm428 = vcmp.lt.s32.totalorder %v427, 17
        %v429 = vsel %vm428, %v423, %v425
        %v430 = vsel %vm428, %v421, %v423
        %v431 = vsel %vm428, %v419, %v421
        %v432 = vsel %vm428, %v425, %v419
        %v433 = vunpack.c.l.bf16 %v414
        %v434 = vunpack.c.h.bf16 %v414
        %v435 = vunpack.c.l.bf16 %v415
        %v436 = vunpack.c.h.bf16 %v415
        %v437 = vlaneseq
        %v438 = vshrl.u32 %v437, 7
        %v439 = vsub.s32 0, %v438
        %v440 = vrot.slane %v433, %v439
        %v441 = vlaneseq
        %v442 = vshrl.u32 %v441, 7
        %v443 = vsub.s32 0, %v442
        %v444 = vrot.slane %v434, %v443
        %v445 = vlaneseq
        %v446 = vshrl.u32 %v445, 7
        %v447 = vsub.s32 0, %v446
        %v448 = vrot.slane %v435, %v447
        %v449 = vlaneseq
        %v450 = vshrl.u32 %v449, 7
        %v451 = vsub.s32 0, %v450
        %v452 = vrot.slane %v436, %v451
        %v453 = vmul.f32 %v432, %v440
        %v454 = vmul.f32 %v431, %v444
        %v455 = vmul.f32 %v430, %v448
        %v456 = vmul.f32 %v429, %v452
        %457 = vrot.lane.b32.xlu0 %v410, 16
        %v458 = vpop.permute.xlu0 %457
        %459 = vrot.lane.b32.xlu0 %v411, 16
        %v460 = vpop.permute.xlu0 %459
        %461 = vrot.lane.b32.xlu0 %v412, 16
        %v462 = vpop.permute.xlu0 %461
        %463 = vrot.lane.b32.xlu0 %v413, 16
        %v464 = vpop.permute.xlu0 %463
        %vm465 = vcmp.lt.s32.totalorder %v427, 16
        %v466 = vsel %vm465, %v462, %v464
        %v467 = vsel %vm465, %v460, %v462
        %v468 = vsel %vm465, %v458, %v460
        %v469 = vsel %vm465, %v464, %v458
        %v470 = vlaneseq
        %v471 = vshrl.u32 %v470, 7
        %v472 = vsub.s32 1, %v471
        %v473 = vrot.slane %v433, %v472
        %v474 = vlaneseq
        %v475 = vshrl.u32 %v474, 7
        %v476 = vsub.s32 1, %v475
        %v477 = vrot.slane %v434, %v476
        %v478 = vlaneseq
        %v479 = vshrl.u32 %v478, 7
        %v480 = vsub.s32 1, %v479
        %v481 = vrot.slane %v435, %v480
        %v482 = vlaneseq
        %v483 = vshrl.u32 %v482, 7
        %v484 = vsub.s32 1, %v483
        %v485 = vrot.slane %v436, %v484
        %v486 = vmul.f32 %v469, %v473
        %v487 = vmul.f32 %v468, %v477
        %v488 = vmul.f32 %v467, %v481
        %v489 = vmul.f32 %v466, %v485
        %490 = vrot.lane.b32.xlu0 %v410, 15
        %v491 = vpop.permute.xlu0 %490
        %492 = vrot.lane.b32.xlu0 %v411, 15
        %v493 = vpop.permute.xlu0 %492
        %494 = vrot.lane.b32.xlu0 %v412, 15
        %v495 = vpop.permute.xlu0 %494
        %496 = vrot.lane.b32.xlu0 %v413, 15
        %v497 = vpop.permute.xlu0 %496
        %vm498 = vcmp.lt.s32.totalorder %v427, 15
        %v499 = vsel %vm498, %v495, %v497
        %v500 = vsel %vm498, %v493, %v495
        %v501 = vsel %vm498, %v491, %v493
        %v502 = vsel %vm498, %v497, %v491
        %v503 = vlaneseq
        %v504 = vshrl.u32 %v503, 7
        %v505 = vsub.s32 2, %v504
        %v506 = vrot.slane %v433, %v505
        %v507 = vlaneseq
        %v508 = vshrl.u32 %v507, 7
        %v509 = vsub.s32 2, %v508
        %v510 = vrot.slane %v434, %v509
        %v511 = vlaneseq
        %v512 = vshrl.u32 %v511, 7
        %v513 = vsub.s32 2, %v512
        %v514 = vrot.slane %v435, %v513
        %v515 = vlaneseq
        %v516 = vshrl.u32 %v515, 7
        %v517 = vsub.s32 2, %v516
        %v518 = vrot.slane %v436, %v517
        %v519 = vmul.f32 %v502, %v506
        %v520 = vmul.f32 %v501, %v510
        %v521 = vmul.f32 %v500, %v514
        %v522 = vmul.f32 %v499, %v518
        %523 = vrot.lane.b32.xlu0 %v410, 1
        %v524 = vpop.permute.xlu0 %523
        %525 = vrot.lane.b32.xlu0 %v411, 1
        %v526 = vpop.permute.xlu0 %525
        %527 = vrot.lane.b32.xlu0 %v412, 1
        %v528 = vpop.permute.xlu0 %527
        %529 = vrot.lane.b32.xlu0 %v413, 1
        %v530 = vpop.permute.xlu0 %529
        %vm531 = vcmp.lt.s32.totalorder %v427, 1
        %v532 = vsel %vm531, %v528, %v530
        %v533 = vsel %vm531, %v526, %v528
        %v534 = vsel %vm531, %v524, %v526
        %v535 = vsel %vm531, %v530, %v524
        %v536 = vlaneseq
        %v537 = vshrl.u32 %v536, 7
        %v538 = vsub.s32 3, %v537
        %v539 = vrot.slane %v433, %v538
        %v540 = vlaneseq
        %v541 = vshrl.u32 %v540, 7
        %v542 = vsub.s32 3, %v541
        %v543 = vrot.slane %v434, %v542
        %v544 = vlaneseq
        %v545 = vshrl.u32 %v544, 7
        %v546 = vsub.s32 3, %v545
        %v547 = vrot.slane %v435, %v546
        %v548 = vlaneseq
        %v549 = vshrl.u32 %v548, 7
        %v550 = vsub.s32 3, %v549
        %v551 = vrot.slane %v436, %v550
        %v552 = vmul.f32 %v535, %v539
        %v553 = vmul.f32 %v534, %v543
        %v554 = vmul.f32 %v533, %v547
        %v555 = vmul.f32 %v532, %v551
        %556 = vrot.lane.b32.xlu0 %v410, 127
        %v557 = vpop.permute.xlu0 %556
        %558 = vrot.lane.b32.xlu0 %v411, 127
        %v559 = vpop.permute.xlu0 %558
        %560 = vrot.lane.b32.xlu0 %v412, 127
        %v561 = vpop.permute.xlu0 %560
        %562 = vrot.lane.b32.xlu0 %v413, 127
        %v563 = vpop.permute.xlu0 %562
        %vm564 = vcmp.lt.s32.totalorder %v427, 127
        %v565 = vsel %vm564, %v561, %v563
        %v566 = vsel %vm564, %v559, %v561
        %v567 = vsel %vm564, %v557, %v559
        %v568 = vsel %vm564, %v563, %v557
        %v569 = vlaneseq
        %v570 = vshrl.u32 %v569, 7
        %v571 = vsub.s32 5, %v570
        %v572 = vrot.slane %v433, %v571
        %v573 = vlaneseq
        %v574 = vshrl.u32 %v573, 7
        %v575 = vsub.s32 5, %v574
        %v576 = vrot.slane %v434, %v575
        %v577 = vlaneseq
        %v578 = vshrl.u32 %v577, 7
        %v579 = vsub.s32 5, %v578
        %v580 = vrot.slane %v435, %v579
        %v581 = vlaneseq
        %v582 = vshrl.u32 %v581, 7
        %v583 = vsub.s32 5, %v582
        %v584 = vrot.slane %v436, %v583
        %v585 = vmul.f32 %v567, %v572
        %v586 = vmul.f32 %v566, %v576
        %v587 = vmul.f32 %v565, %v580
        %v588 = vmul.f32 %v568, %v584
        %589 = vrot.lane.b32.xlu0 %v410, 113
        %v590 = vpop.permute.xlu0 %589
        %591 = vrot.lane.b32.xlu0 %v411, 113
        %v592 = vpop.permute.xlu0 %591
        %593 = vrot.lane.b32.xlu0 %v412, 113
        %v594 = vpop.permute.xlu0 %593
        %595 = vrot.lane.b32.xlu0 %v413, 113
        %v596 = vpop.permute.xlu0 %595
        %vm597 = vcmp.lt.s32.totalorder %v427, 113
        %v598 = vsel %vm597, %v594, %v596
        %v599 = vsel %vm597, %v592, %v594
        %v600 = vsel %vm597, %v590, %v592
        %v601 = vsel %vm597, %v596, %v590
        %v602 = vlaneseq
        %v603 = vshrl.u32 %v602, 7
        %v604 = vsub.s32 6, %v603
        %v605 = vrot.slane %v433, %v604
        %v606 = vlaneseq
        %v607 = vshrl.u32 %v606, 7
        %v608 = vsub.s32 6, %v607
        %v609 = vrot.slane %v434, %v608
        %v610 = vlaneseq
        %v611 = vshrl.u32 %v610, 7
        %v612 = vsub.s32 6, %v611
        %v613 = vrot.slane %v435, %v612
        %v614 = vlaneseq
        %v615 = vshrl.u32 %v614, 7
        %v616 = vsub.s32 6, %v615
        %v617 = vrot.slane %v436, %v616
        %v618 = vmul.f32 %v600, %v605
        %v619 = vmul.f32 %v599, %v609
        %v620 = vmul.f32 %v598, %v613
        %v621 = vmul.f32 %v601, %v617
        %622 = vrot.lane.b32.xlu0 %v410, 112
        %v623 = vpop.permute.xlu0 %622
        %624 = vrot.lane.b32.xlu0 %v411, 112
        %v625 = vpop.permute.xlu0 %624
        %626 = vrot.lane.b32.xlu0 %v412, 112
        %v627 = vpop.permute.xlu0 %626
        %628 = vrot.lane.b32.xlu0 %v413, 112
        %v629 = vpop.permute.xlu0 %628
        %vm630 = vcmp.lt.s32.totalorder %v427, 112
        %v631 = vsel %vm630, %v627, %v629
        %v632 = vsel %vm630, %v625, %v627
        %v633 = vsel %vm630, %v623, %v625
        %v634 = vsel %vm630, %v629, %v623
        %v635 = vlaneseq
        %v636 = vshrl.u32 %v635, 7
        %v637 = vsub.s32 7, %v636
        %v638 = vrot.slane %v433, %v637
        %v639 = vlaneseq
        %v640 = vshrl.u32 %v639, 7
        %v641 = vsub.s32 7, %v640
        %v642 = vrot.slane %v434, %v641
        %v643 = vlaneseq
        %v644 = vshrl.u32 %v643, 7
        %v645 = vsub.s32 7, %v644
        %v646 = vrot.slane %v435, %v645
        %v647 = vlaneseq
        %v648 = vshrl.u32 %v647, 7
        %v649 = vsub.s32 7, %v648
        %v650 = vrot.slane %v436, %v649
        %v651 = vmul.f32 %v633, %v638
        %v652 = vmul.f32 %v632, %v642
        %v653 = vmul.f32 %v631, %v646
        %v654 = vmul.f32 %v634, %v650
        %655 = vrot.lane.b32.xlu0 %v410, 111
        %v656 = vpop.permute.xlu0 %655
        %657 = vrot.lane.b32.xlu0 %v411, 111
        %v658 = vpop.permute.xlu0 %657
        %659 = vrot.lane.b32.xlu0 %v412, 111
        %v660 = vpop.permute.xlu0 %659
        %661 = vrot.lane.b32.xlu0 %v413, 111
        %v662 = vpop.permute.xlu0 %661
        %vm663 = vcmp.lt.s32.totalorder %v427, 111
        %v664 = vsel %vm663, %v660, %v662
        %v665 = vsel %vm663, %v658, %v660
        %v666 = vsel %vm663, %v656, %v658
        %v667 = vsel %vm663, %v662, %v656
        %v668 = vunpack.c.l.bf16 %v416
        %v669 = vunpack.c.h.bf16 %v416
        %v670 = vunpack.c.l.bf16 %v417
        %v671 = vunpack.c.h.bf16 %v417
        %v672 = vlaneseq
        %v673 = vshrl.u32 %v672, 7
        %v674 = vsub.s32 0, %v673
        %v675 = vrot.slane %v668, %v674
        %v676 = vlaneseq
        %v677 = vshrl.u32 %v676, 7
        %v678 = vsub.s32 0, %v677
        %v679 = vrot.slane %v669, %v678
        %v680 = vlaneseq
        %v681 = vshrl.u32 %v680, 7
        %v682 = vsub.s32 0, %v681
        %v683 = vrot.slane %v670, %v682
        %v684 = vlaneseq
        %v685 = vshrl.u32 %v684, 7
        %v686 = vsub.s32 0, %v685
        %v687 = vrot.slane %v671, %v686
        %v688 = vmul.f32 %v666, %v675
        %v689 = vmul.f32 %v665, %v679
        %v690 = vmul.f32 %v664, %v683
        %v691 = vmul.f32 %v667, %v687
        %v692 = vpack.c.bf16 %v486, %v453
        %v693 = vpack.c.bf16 %v487, %v454
        %v694 = vpack.c.bf16 %v488, %v455
        %v695 = vpack.c.bf16 %v489, %v456
        %v696 = vpack.c.bf16 %v552, %v519
        %v697 = vpack.c.bf16 %v553, %v520
        %v698 = vpack.c.bf16 %v554, %v521
        %v699 = vpack.c.bf16 %v555, %v522
        %v700 = vpack.c.bf16 %v585, %v410
        %v701 = vpack.c.bf16 %v586, %v411
        %v702 = vpack.c.bf16 %v587, %v412
        %v703 = vpack.c.bf16 %v588, %v413
        %v704 = vpack.c.bf16 %v651, %v618
        %v705 = vpack.c.bf16 %v652, %v619
        %v706 = vpack.c.bf16 %v653, %v620
        %v707 = vpack.c.bf16 %v654, %v621
        %v708 = vpack.c.bf16 %v688, %v688
        %v709 = vpack.c.bf16 %v689, %v689
        %v710 = vpack.c.bf16 %v690, %v690
        %v711 = vpack.c.bf16 %v691, %v691
        %v712 = vld [vmem:[%s3] sm:$0xf]
        %v713 = vld [vmem:[%s3 + $0x4] sm:$0xf]
        %v714 = vld [vmem:[%s4] sm:$0xff]
        %v715 = vld [vmem:[%s4 + $0x8] sm:$0xff]
        %717 = vset.pattern.permute.xlu0 0
        %718 = vperm.xlu0 %717, %v714
        %v719 = vpop.permute.xlu0 %718
        %722 = vset.pattern.permute.xlu0 0
        %723 = vperm.xlu0 %722, %v715
        %v724 = vpop.permute.xlu0 %723
        %v728 = vunpack.c.l.b16 %v712
        %v729 = vunpack.c.l.b16 %v713
        %v730 = vpack.c.b16 %v729, %v728
        %vm731 = vcmask 588800
        %v733 = vsel %vm731, %v730, 0
        %vm735 = vcmask 1043456
        %v737 = vsel %vm735, %v708, 0
        %v740 = vsel %vm735, %v709, 0
        %v743 = vsel %vm735, %v710, 0
        %v746 = vsel %vm735, %v711, 0
        %748 = vmatprep.subr.bf16.mxu0 %v693
        %749 = vmatpush1.bf16.msra.mxu0 %v692
        %750 = vmatprep.subr.bf16.mxu0 %v697
        %751 = vmatpush1.bf16.msra.mxu0 %v696
        %752 = vmatprep.subr.bf16.mxu0 %v701
        %753 = vmatpush1.bf16.msra.mxu0 %v700
        %754 = vmatprep.subr.bf16.mxu0 %v705
        %755 = vmatpush1.bf16.msra.mxu0 %v704
        %756 = vmatprep.subr.bf16.mxu0 %v740
        %757 = vmatpush1.bf16.msra.mxu0 %v737
        %758 = vmatprep.subr.bf16.mxu0 0
        %759 = vmatpush1.bf16.msra.mxu0 0
        %760 = vmatprep.subr.bf16.mxu0 0
        %761 = vmatpush1.bf16.msra.mxu0 0
        %762 = vmatprep.subr.bf16.mxu0 0
        %763 = vmatpush1.bf16.msra.mxu0 0
        %764 = vmatprep.subr.bf16.mxu0 0
        %765 = vmatpush1.bf16.msra.mxu0 0
        %766 = vmatprep.subr.bf16.mxu0 0
        %767 = vmatpush1.bf16.msra.mxu0 0
        %768 = vmatprep.subr.bf16.mxu0 0
        %769 = vmatpush1.bf16.msra.mxu0 0
        %770 = vmatprep.subr.bf16.mxu0 0
        %771 = vmatpush1.bf16.msra.mxu0 0
        %772 = vmatprep.subr.bf16.mxu0 0
        %773 = vmatpush1.bf16.msra.mxu0 0
        %774 = vmatprep.subr.bf16.mxu0 0
        %775 = vmatpush1.bf16.msra.mxu0 0
        %776 = vmatprep.subr.bf16.mxu0 0
        %777 = vmatpush1.bf16.msra.mxu0 0
        %778 = vmatprep.subr.bf16.mxu0 0
        %779 = vmatpush1.bf16.msra.mxu0 0
        %780 = vmatprep.mubr.bf16.mxu0 0
        %781 = vmatmul.mubr.bf16.gmra.mrb[0].mxu0 %v733
        %v782 = vpop.f32.mrb[0].mxu0
        %v783 = vadd.f32 %v719, %v782
        %v784 = vpop.f32.mrb[0].mxu0
        %v785 = vadd.f32 %v719, %v784
        %v786 = vpop.f32.mrb[0].mxu0
        %v787 = vadd.f32 %v724, %v786
        %v788 = vpop.f32.mrb[0].mxu0
        %v789 = vadd.f32 %v724, %v788
        %790 = vdwg.mxu0
        %791 = vmatprep.subr.bf16.mxu0 %v695
        %792 = vmatpush1.bf16.msra.mxu0 %v694
        %793 = vmatprep.subr.bf16.mxu0 %v699
        %794 = vmatpush1.bf16.msra.mxu0 %v698
        %795 = vmatprep.subr.bf16.mxu0 %v703
        %796 = vmatpush1.bf16.msra.mxu0 %v702
        %797 = vmatprep.subr.bf16.mxu0 %v707
        %798 = vmatpush1.bf16.msra.mxu0 %v706
        %799 = vmatprep.subr.bf16.mxu0 %v746
        %800 = vmatpush1.bf16.msra.mxu0 %v743
        %801 = vmatprep.subr.bf16.mxu0 0
        %802 = vmatpush1.bf16.msra.mxu0 0
        %803 = vmatprep.subr.bf16.mxu0 0
        %804 = vmatpush1.bf16.msra.mxu0 0
        %805 = vmatprep.subr.bf16.mxu0 0
        %806 = vmatpush1.bf16.msra.mxu0 0
        %807 = vmatprep.subr.bf16.mxu0 0
        %808 = vmatpush1.bf16.msra.mxu0 0
        %809 = vmatprep.subr.bf16.mxu0 0
        %810 = vmatpush1.bf16.msra.mxu0 0
        %811 = vmatprep.subr.bf16.mxu0 0
        %812 = vmatpush1.bf16.msra.mxu0 0
        %813 = vmatprep.subr.bf16.mxu0 0
        %814 = vmatpush1.bf16.msra.mxu0 0
        %815 = vmatprep.subr.bf16.mxu0 0
        %816 = vmatpush1.bf16.msra.mxu0 0
        %817 = vmatprep.subr.bf16.mxu0 0
        %818 = vmatpush1.bf16.msra.mxu0 0
        %819 = vmatprep.subr.bf16.mxu0 0
        %820 = vmatpush1.bf16.msra.mxu0 0
        %821 = vmatprep.subr.bf16.mxu0 0
        %822 = vmatpush1.bf16.msra.mxu0 0
        %823 = vmatprep.mubr.bf16.mxu0 0
        %824 = vmatmul.mubr.bf16.gmra.mrb[0].mxu0 %v733
        %v825 = vpop.f32.mrb[0].mxu0
        %v826 = vadd.f32 %v719, %v825
        %v827 = vpop.f32.mrb[0].mxu0
        %v828 = vadd.f32 %v719, %v827
        %v829 = vpop.f32.mrb[0].mxu0
        %v830 = vadd.f32 %v724, %v829
        %v831 = vpop.f32.mrb[0].mxu0
        %v832 = vadd.f32 %v724, %v831
        %833 = vdwg.mxu0
        %v834 = vmin.f32 %v783, 20.0
        %v835 = vmin.f32 %v785, 20.0
        %v836 = vmin.f32 %v826, 20.0
        %v837 = vmin.f32 %v828, 20.0
        %v838 = vmin.f32 %v787, 20.0
        %v839 = vmin.f32 %v789, 20.0
        %v840 = vmin.f32 %v830, 20.0
        %v841 = vmin.f32 %v832, 20.0
        %v842 = vmul.f32 %v834, 1.442695
        %v843 = vpow.pop %v842
        %v844 = vmul.f32 %v835, 1.442695
        %v845 = vpow.pop %v844
        %v846 = vmul.f32 %v836, 1.442695
        %v847 = vpow.pop %v846
        %v848 = vmul.f32 %v837, 1.442695
        %v849 = vpow.pop %v848
        %v850 = vmul.f32 %v838, 1.442695
        %v851 = vpow.pop %v850
        %v852 = vmul.f32 %v839, 1.442695
        %v853 = vpow.pop %v852
        %v854 = vmul.f32 %v840, 1.442695
        %v855 = vpow.pop %v854
        %v856 = vmul.f32 %v841, 1.442695
        %v857 = vpow.pop %v856
        %v858 = vadd.f32 %v843, 2.0
        %v859 = vadd.f32 %v845, 2.0
        %v860 = vadd.f32 %v847, 2.0
        %v861 = vadd.f32 %v849, 2.0
        %v862 = vadd.f32 %v851, 2.0
        %v863 = vadd.f32 %v853, 2.0
        %v864 = vadd.f32 %v855, 2.0
        %v865 = vadd.f32 %v857, 2.0
        %v866 = vmul.f32 %v843, %v858
        %v867 = vmul.f32 %v845, %v859
        %v868 = vmul.f32 %v847, %v860
        %v869 = vmul.f32 %v849, %v861
        %v870 = vmul.f32 %v851, %v862
        %v871 = vmul.f32 %v853, %v863
        %v872 = vmul.f32 %v855, %v864
        %v873 = vmul.f32 %v857, %v865
        %v874 = vmul.f32 %v783, %v866
        %v875 = vmul.f32 %v785, %v867
        %v876 = vmul.f32 %v826, %v868
        %v877 = vmul.f32 %v828, %v869
        %v878 = vmul.f32 %v787, %v870
        %v879 = vmul.f32 %v789, %v871
        %v880 = vmul.f32 %v830, %v872
        %v881 = vmul.f32 %v832, %v873
        %v882 = vadd.f32 %v866, 2.0
        %v883 = vadd.f32 %v867, 2.0
        %v884 = vadd.f32 %v868, 2.0
        %v885 = vadd.f32 %v869, 2.0
        %v886 = vadd.f32 %v870, 2.0
        %v887 = vadd.f32 %v871, 2.0
        %v888 = vadd.f32 %v872, 2.0
        %v889 = vadd.f32 %v873, 2.0
        %v890 = vrcp.pop %v882
        %v891 = vrcp.pop %v883
        %v892 = vrcp.pop %v884
        %v893 = vrcp.pop %v885
        %v894 = vrcp.pop %v886
        %v895 = vrcp.pop %v887
        %v896 = vrcp.pop %v888
        %v897 = vrcp.pop %v889
        %v898 = vmul.f32 %v874, %v890
        %v899 = vmul.f32 %v875, %v891
        %v900 = vmul.f32 %v876, %v892
        %v901 = vmul.f32 %v877, %v893
        %v902 = vmul.f32 %v878, %v894
        %v903 = vmul.f32 %v879, %v895
        %v904 = vmul.f32 %v880, %v896
        %v905 = vmul.f32 %v881, %v897
        %v906 = vadd.f32 %v898, %v273
        %v907 = vadd.f32 %v899, %v274
        %v908 = vadd.f32 %v900, %v275
        %v909 = vadd.f32 %v901, %v276
        %v910 = vadd.f32 %v902, %v277
        %v911 = vadd.f32 %v903, %v278
        %v912 = vadd.f32 %v904, %v279
        %v913 = vadd.f32 %v905, %v280
        %914 = vst [vmem:[%s269] sm:$0xff] %v906
        %915 = vst [vmem:[%s269 + $0x8] sm:$0xff] %v907
        %916 = vst [vmem:[%s269 + $0x10] sm:$0xff] %v908
        %917 = vst [vmem:[%s269 + $0x18] sm:$0xff] %v909
        %918 = vst [vmem:[%s269 + $0x20] sm:$0xff] %v910
        %919 = vst [vmem:[%s269 + $0x28] sm:$0xff] %v911
        %920 = vst [vmem:[%s269 + $0x30] sm:$0xff] %v912
        %921 = vst [vmem:[%s269 + $0x38] sm:$0xff] %v913
        %s922 = sand.u32 %s162, 1
        %s923 = scalar_lea.sflag [#allocation4], %s922
        %s924 = sand.u32 %s162, 1
        %s925 = smul.addr %s924, 64
        %s926 = scalar_lea.vmem [#allocation5], %s925
        // Predicated region
        $region49: #{tpu_custom_call.1} parent=43 // pred_check
          %p927 = pneg %p172
        $region50: #{tpu_custom_call.1} parent=43 // pred_check_branch
          %929 = sbr.rel (%p927) target = $region52
        $region51: #{tpu_custom_call.1} parent=43 // pred_region
          %s930 = smul.u32 4, %s23
          %s932 = ssub.s32 1024, 1024
          %933 = vsyncadd %s923, %s932
          %s934 = smul.addr %s930, 128
          %s935 = scalar_lea.hbm %s6, %s934
          %s936 = sshll.u32 %s926, 4
          %s937 = int_to_ptr.vmem [resolvable:$true] %s936
          %942 = dma.vmem_to_hbm [thread:$0]  %s937, 1024, %s935, %s923, 512, 1024, 32
        $region52: #{tpu_custom_call.1} parent=43 // pred_fallthru
          _
      $region44: #{tpu_custom_call.1} parent=5 // pred_fallthru
        _
      %p943 = scmp.le.s32.totalorder 2, %s18
      // Predicated region
      $region53: #{tpu_custom_call.1} parent=5 // pred_check
        %p944 = pneg %p943
      $region54: #{tpu_custom_call.1} parent=5 // pred_check_branch
        %946 = sbr.rel (%p944) target = $region56
      $region55: #{tpu_custom_call.1} parent=5 // pred_region
        %s947 = ssub.s32 %s18, 2
        // Predicated region
        $region57: #{tpu_custom_call.1} parent=55 // pred_check
          %p948 = pneg %p178
        $region58: #{tpu_custom_call.1} parent=55 // pred_check_branch
          %950 = sbr.rel (%p948) target = $region60
        $region59: #{tpu_custom_call.1} parent=55 // pred_region
          %s951 = sand.u32 %s163, 1
          %s952 = scalar_lea.sflag [#allocation4], %s951
          %s953 = sand.u32 %s163, 1
          %s954 = smul.addr %s953, 64
          %s955 = scalar_lea.vmem [#allocation5], %s954
          %956 = dma.done %s952, 1024
        $region60: #{tpu_custom_call.1} parent=55 // pred_fallthru
          _
      $region56: #{tpu_custom_call.1} parent=5 // pred_fallthru
        _
    $region6: #{tpu_custom_call.1} parent=1 // loop_footer
      %s22 = sadd.s32 1, %s18
    $region7: #{tpu_custom_call.1} parent=1 // loop_footer_branch
      %17 = sbr.rel target = $region3
    $region8: #{tpu_custom_call.1} parent=1 // loop_exit
      _
    %957 = vsyncpa [#allocation3], 1
    %s958 = scalar_lea.sflag [#allocation3], 1
    %959 = vsyncpa %s958, 1
    %960 = vsyncpa [#allocation4], 1
    %s961 = scalar_lea.sflag [#allocation4], 1
    %962 = vsyncpa %s961, 1

</llo_original>
